<compile_context>
chip_gen: v7x
topology: tpu7x:2x2x1
jax: 0.10.0
libtpu: 0.0.40
codegen_flags: <defaults>
</compile_context>

<pallas_src>
import math

import jax
import jax.numpy as jnp
from jax.experimental import pallas as pl
from jax.experimental.pallas import tpu as pltpu


# ------------------------------ fused kernel ---------------------------------
def _transition_kernel(x_ref, s_ref, b_ref, w_ref, bias_ref, o_ref):
    # x_ref   : (NB, 2*TH, Wo, 2*Cin)  row band, pixel pairs packed on lanes
    # s_ref   : (1, 2*Cin)  folded BN scale (tiled twice)           f32
    # b_ref   : (1, 2*Cin)  folded BN shift (tiled twice)           f32
    # w_ref   : (2*Cin, CoutP)  1x1 weight stacked twice, pre-scaled by 0.25  bf16
    # bias_ref: (1, CoutP)                                          f32
    # o_ref   : (NB, TH, Wo, CoutP)
    nb, th, wo, cout = o_ref.shape
    cin2 = x_ref.shape[-1]

    # BN (eval, folded) + ReLU on the VPU in f32 (v5e has no bf16 VALU).
    x = x_ref[...].astype(jnp.float32)                  # (NB, 2*TH, Wo, 2*Cin)
    s = s_ref[...].reshape(1, 1, 1, cin2)
    b = b_ref[...].reshape(1, 1, 1, cin2)
    h = jnp.maximum(x * s + b, 0.0)

    # Row half of the 2x2 average pool: add adjacent rows.  (NB, 2*TH) ->
    # (NB*TH, 2) is a pure leading-dim regroup (2*TH even), no relayout.  The
    # 0.25 pooling factor lives in w_ref.
    h = h.reshape(nb * th, 2, wo, cin2)
    hr = h[:, 0] + h[:, 1]                              # (NB*TH, Wo, 2*Cin)

    # Column half of the pool + 1x1 conv on the MXU: w_ref = 0.25*[w; w], so
    # contracting over 2*Cin sums the even/odd-column contributions.  bf16
    # operands, f32 accumulation.
    m = nb * th * wo
    y = jnp.dot(hr.reshape(m, cin2).astype(jnp.bfloat16), w_ref[...],
                preferred_element_type=jnp.float32)     # (M, CoutP)
    y = y + bias_ref[...]
    o_ref[...] = y.reshape(nb, th, wo, cout).astype(o_ref.dtype)


# ------------------------------ tiling helpers --------------------------------
_VMEM_BLOCK_BUDGET = 36 * 1024 * 1024   # safe inside v7x 64 MiB physical VMEM


def _choose_tiles(n, ho, wo, cin2, cout, in_itemsize, out_itemsize):
    """Pick (nb, th): batch-block and output-row-tile sizes.

    Prefer th = ho (whole image per grid step); then fold batch elements into
    the matmul M until M >= 256 (one full v6e/v7x MXU pass), all while the
    double-buffered in/out blocks + f32 intermediates stay under the budget."""
    def footprint(nb, th):
        in_b = nb * (2 * th) * wo * cin2 * in_itemsize
        out_b = nb * th * wo * cout * out_itemsize
        inter = nb * (2 * th) * wo * cin2 * 4           # f32 h / hr temporaries
        return 2 * in_b + 2 * out_b + 2 * inter

    th = 1
    for d in range(1, ho + 1):
        if ho % d == 0 and footprint(1, d) <= _VMEM_BLOCK_BUDGET:
            th = d

    nb = 1
    for d in range(2, n + 1):
        if n % d != 0:
            continue
        if nb * th * wo >= 256:
            break
        if footprint(d, th) <= _VMEM_BLOCK_BUDGET:
            nb = d
    return nb, th


def _transition_stage(x2, s2, b2, w2, bias, nb, th):
    n, h2, wo, cin2 = x2.shape
    cout = w2.shape[1]
    ho = h2 // 2
    grid = (n // nb, ho // th)

    in_block = nb * (2 * th) * wo * cin2 * x2.dtype.itemsize
    out_block = nb * th * wo * cout * x2.dtype.itemsize
    inter = nb * (2 * th) * wo * cin2 * 4
    footprint = 2 * in_block + 2 * out_block + 2 * inter
    vmem_limit = int(min(48 * 1024 * 1024,
                         max(16 * 1024 * 1024, 1.5 * footprint + (2 << 20))))

    flops = 2 * (n * ho * wo) * cin2 * cout + 6 * n * (2 * ho) * wo * cin2
    bytes_accessed = (x2.size * x2.dtype.itemsize
                      + n * ho * wo * cout * x2.dtype.itemsize
                      + w2.size * 2 + (s2.size + b2.size + bias.size) * 4)

    return pl.pallas_call(
        _transition_kernel,
        out_shape=jax.ShapeDtypeStruct((n, ho, wo, cout), x2.dtype),
        grid_spec=pltpu.PrefetchScalarGridSpec(
            num_scalar_prefetch=0,
            grid=grid,
            in_specs=[
                pl.BlockSpec((nb, 2 * th, wo, cin2), lambda i, r: (i, r, 0, 0)),
                pl.BlockSpec((1, cin2), lambda i, r: (0, 0)),
                pl.BlockSpec((1, cin2), lambda i, r: (0, 0)),
                pl.BlockSpec((cin2, cout), lambda i, r: (0, 0)),
                pl.BlockSpec((1, cout), lambda i, r: (0, 0)),
            ],
            out_specs=pl.BlockSpec((nb, th, wo, cout), lambda i, r: (i, r, 0, 0)),
        ),
        compiler_params=pltpu.CompilerParams(
            dimension_semantics=("parallel", "parallel"),
            vmem_limit_bytes=vmem_limit),
        cost_estimate=pl.CostEstimate(
            flops=int(flops), transcendentals=0,
            bytes_accessed=int(bytes_accessed)),
    )(x2, s2, b2, w2, bias)


# ------------------------------ module wrappers --------------------------------
def init_transition_layer_params(key, in_channels, theta):
    cout = int(theta * in_channels)
    k1, k2 = jax.random.split(key)
    bound = 1.0 / math.sqrt(in_channels * 1 * 1)
    return dict(
        bn_gamma=jnp.ones((in_channels,), jnp.float32),
        bn_beta=jnp.zeros((in_channels,), jnp.float32),
        bn_mean=jnp.zeros((in_channels,), jnp.float32),
        bn_var=jnp.ones((in_channels,), jnp.float32),
        w=jax.random.uniform(k1, (in_channels, cout), jnp.float32, -bound, bound),
        b=jax.random.uniform(k2, (cout,), jnp.float32, -bound, bound),
    )


def transition_layer_forward_nhwc(x_nhwc, params, eps=1e-5):
    """NHWC entry point: (N, H, W, Cin) -> (N, H//2, W//2, Cout), same dtype.
    Use this directly when the surrounding model is NHWC to avoid relayouts."""
    n, h, w, cin = x_nhwc.shape
    ho, wo = h // 2, w // 2
    cout = params["w"].shape[1]

    # Sublane/lane padding (no-ops at the shapes used here and at typical
    # DenseNet widths): Wo -> multiple of 8; Cout -> multiple of 128 only when
    # that costs <= ~2x output bytes (i.e. Cout >= 64).
    wo_p = ((wo + 7) // 8) * 8 if wo % 8 else wo
    cout_p = ((cout + 127) // 128) * 128 if (cout % 128 and cout >= 64) else cout

    x = x_nhwc[:, : 2 * ho, : 2 * wo, :]
    if wo_p != wo:
        x = jnp.pad(x, ((0, 0), (0, 0), (0, 2 * (wo_p - wo)), (0, 0)))
    # Pack horizontal pixel pairs onto the lane axis (contiguous reshape):
    # (N, H, 2*WoP, C) -> (N, H, WoP, 2C).
    x2 = x.reshape(n, 2 * ho, wo_p, 2 * cin)

    # Fold eval-mode BN into per-channel scale/shift; fold the 2x2 pool's 0.25
    # into the twice-stacked 1x1 weight.
    s = params["bn_gamma"] * jax.lax.rsqrt(params["bn_var"] + eps)
    b = params["bn_beta"] - params["bn_mean"] * s
    s2 = jnp.concatenate([s, s]).reshape(1, 2 * cin).astype(jnp.float32)
    b2 = jnp.concatenate([b, b]).reshape(1, 2 * cin).astype(jnp.float32)
    w = params["w"].astype(jnp.float32)
    w2 = 0.25 * jnp.concatenate([w, w], axis=0)                # (2*Cin, Cout)
    bias = params["b"].astype(jnp.float32).reshape(1, -1)
    if cout_p != cout:
        w2 = jnp.pad(w2, ((0, 0), (0, cout_p - cout)))
        bias = jnp.pad(bias, ((0, 0), (0, cout_p - cout)))
    w2 = w2.astype(jnp.bfloat16)                               # MXU-native operand

    nb, th = _choose_tiles(n, ho, wo_p, 2 * cin, cout_p,
                           x2.dtype.itemsize, x2.dtype.itemsize)
    out = _transition_stage(x2, s2, b2, w2, bias, nb, th)
    return out[:, :, :wo, :cout]


@jax.jit
def transition_layer_forward(x_nchw, params):
    # TODO(synk): training-mode BatchNorm (batch statistics) is not implemented;
    # eval-mode running statistics are folded into scale/shift.
    n, cin, h, w = x_nchw.shape
    ho, wo = h // 2, w // 2                       # AvgPool2d(2,2) floors odd edges
    # Single fused slice+transpose pass each way (the unavoidable cost of a
    # NCHW API on TPU); NHWC callers should use transition_layer_forward_nhwc.
    x_nhwc = jnp.transpose(x_nchw[:, :, : 2 * ho, : 2 * wo], (0, 2, 3, 1))
    out = transition_layer_forward_nhwc(x_nhwc, params)
    return jnp.transpose(out, (0, 3, 1, 2))


if __name__ == "__main__":
    key = jax.random.PRNGKey(0)
    kx, kp = jax.random.split(key)

    batch, in_channels, spatial, theta = 2, 4, 16, 0.5
    x = jax.random.normal(kx, (batch, in_channels, spatial, spatial), jnp.float32)
    params = init_transition_layer_params(kp, in_channels, theta)

    out = transition_layer_forward(x, params)
    out = jax.block_until_ready(out)

    # Pure-JAX f32 reference (eval-mode BN, conv then avg-pool).
    eps = 1e-5
    xn = (x - params["bn_mean"][None, :, None, None]) * jax.lax.rsqrt(
        params["bn_var"][None, :, None, None] + eps)
    xn = xn * params["bn_gamma"][None, :, None, None] + params["bn_beta"][None, :, None, None]
    hrelu = jnp.maximum(xn, 0.0)
    w_oihw = jnp.transpose(params["w"], (1, 0))[:, :, None, None]
    y = jax.lax.conv_general_dilated(hrelu, w_oihw, (1, 1), "VALID",
                                     dimension_numbers=("NCHW", "OIHW", "NCHW"))
    y = y + params["b"][None, :, None, None]
    cout = int(theta * in_channels)
    ref = y.reshape(batch, cout, spatial // 2, 2, spatial // 2, 2).mean(axis=(3, 5))

    assert out.shape == (batch, cout, spatial // 2, spatial // 2), out.shape
    # bf16 matmul operands (f32 accumulation) -> loosen tolerance vs f32 ref.
    assert jnp.allclose(out, ref, atol=5e-2, rtol=5e-2), float(jnp.max(jnp.abs(out - ref)))
    print("KERNEL_OK")
</pallas_src>

<mosaic_0001>
module attributes {stable_mosaic.version = 11 : i64} {
  func.func @_transition_kernel(%arg0: i32, %arg1: i32, %arg2: memref<2x16x8x8xf32, #tpu.memory_space<vmem>>, %arg3: memref<1x8xf32, #tpu.memory_space<vmem>>, %arg4: memref<1x8xf32, #tpu.memory_space<vmem>>, %arg5: memref<8x2xbf16, #tpu.memory_space<vmem>>, %arg6: memref<1x2xf32, #tpu.memory_space<vmem>>, %arg7: memref<2x8x8x2xf32, #tpu.memory_space<vmem>>) attributes {dimension_semantics = [#tpu.dimension_semantics<parallel>, #tpu.dimension_semantics<parallel>], iteration_bounds = array<i64: 1, 1>, scalar_prefetch = 0 : i64, scratch_operands = 0 : i64, tpu.core_type = #tpu.core_type<tc>, window_params = [{transform_indices = @transform_0, window_bounds = array<i64: 2, 16, 8, 8>}, {pipeline_mode = #tpu.pipeline_mode<synchronous>, transform_indices = @transform_1, window_bounds = array<i64: 1, 8>}, {pipeline_mode = #tpu.pipeline_mode<synchronous>, transform_indices = @transform_2, window_bounds = array<i64: 1, 8>}, {pipeline_mode = #tpu.pipeline_mode<synchronous>, transform_indices = @transform_3, window_bounds = array<i64: 8, 2>}, {pipeline_mode = #tpu.pipeline_mode<synchronous>, transform_indices = @transform_4, window_bounds = array<i64: 1, 2>}, {transform_indices = @transform_5, window_bounds = array<i64: 2, 8, 8, 2>}]} {
    %c0 = arith.constant 0 : index
    %c0_0 = arith.constant 0 : index
    %c0_1 = arith.constant 0 : index
    %c0_2 = arith.constant 0 : index
    %0 = vector.load %arg2[%c0, %c0_0, %c0_1, %c0_2] : memref<2x16x8x8xf32, #tpu.memory_space<vmem>>, vector<2x16x8x8xf32>
    %c0_3 = arith.constant 0 : index
    %c0_4 = arith.constant 0 : index
    %1 = vector.load %arg3[%c0_3, %c0_4] : memref<1x8xf32, #tpu.memory_space<vmem>>, vector<1x8xf32>
    %2 = vector.shape_cast %1 : vector<1x8xf32> to vector<1x1x1x8xf32>
    %c0_5 = arith.constant 0 : index
    %c0_6 = arith.constant 0 : index
    %3 = vector.load %arg4[%c0_5, %c0_6] : memref<1x8xf32, #tpu.memory_space<vmem>>, vector<1x8xf32>
    %4 = vector.shape_cast %3 : vector<1x8xf32> to vector<1x1x1x8xf32>
    %5 = vector.broadcast %2 : vector<1x1x1x8xf32> to vector<2x16x8x8xf32>
    %6 = arith.mulf %0, %5 : vector<2x16x8x8xf32>
    %7 = vector.broadcast %4 : vector<1x1x1x8xf32> to vector<2x16x8x8xf32>
    %8 = arith.addf %6, %7 : vector<2x16x8x8xf32>
    %cst = arith.constant 0.000000e+00 : f32
    %9 = vector.broadcast %cst : f32 to vector<2x16x8x8xf32>
    %10 = arith.maximumf %8, %9 : vector<2x16x8x8xf32>
    %11 = vector.shape_cast %10 : vector<2x16x8x8xf32> to vector<16x2x8x8xf32>
    %12 = vector.extract_strided_slice %11 {offsets = [0, 0, 0, 0], sizes = [16, 1, 8, 8], strides = [1, 1, 1, 1]} : vector<16x2x8x8xf32> to vector<16x1x8x8xf32>
    %13 = vector.shape_cast %12 : vector<16x1x8x8xf32> to vector<16x8x8xf32>
    %14 = vector.extract_strided_slice %11 {offsets = [0, 1, 0, 0], sizes = [16, 1, 8, 8], strides = [1, 1, 1, 1]} : vector<16x2x8x8xf32> to vector<16x1x8x8xf32>
    %15 = vector.shape_cast %14 : vector<16x1x8x8xf32> to vector<16x8x8xf32>
    %16 = arith.addf %13, %15 : vector<16x8x8xf32>
    %17 = vector.shape_cast %16 : vector<16x8x8xf32> to vector<128x8xf32>
    %18 = arith.truncf %17 : vector<128x8xf32> to vector<128x8xbf16>
    %c0_7 = arith.constant 0 : index
    %c0_8 = arith.constant 0 : index
    %19 = vector.load %arg5[%c0_7, %c0_8] : memref<8x2xbf16, #tpu.memory_space<vmem>>, vector<8x2xbf16>
    %cst_9 = arith.constant dense<0.000000e+00> : vector<128x2xf32>
    %20 = tpu.matmul %18, %19, %cst_9 {dimension_numbers = #tpu.dot_dimension_numbers<[1], [0], [0], [1], [0, 0, 1, 1], [], []>} : vector<128x8xbf16>, vector<8x2xbf16>, vector<128x2xf32> -> vector<128x2xf32>
    %c0_10 = arith.constant 0 : index
    %c0_11 = arith.constant 0 : index
    %21 = vector.load %arg6[%c0_10, %c0_11] : memref<1x2xf32, #tpu.memory_space<vmem>>, vector<1x2xf32>
    %22 = vector.broadcast %21 : vector<1x2xf32> to vector<128x2xf32>
    %23 = arith.addf %20, %22 : vector<128x2xf32>
    %24 = vector.shape_cast %23 : vector<128x2xf32> to vector<2x8x8x2xf32>
    %c0_12 = arith.constant 0 : index
    %c0_13 = arith.constant 0 : index
    %c0_14 = arith.constant 0 : index
    %c0_15 = arith.constant 0 : index
    %25 = vector.load %arg7[%c0_12, %c0_13, %c0_14, %c0_15] : memref<2x8x8x2xf32, #tpu.memory_space<vmem>>, vector<2x8x8x2xf32>
    tpu.vector_store %arg7[%c0_12, %c0_13, %c0_14, %c0_15], %24 {strides = array<i32>} : memref<2x8x8x2xf32, #tpu.memory_space<vmem>>, vector<2x8x8x2xf32>,
    return
  }
  func.func @transform_0(%arg0: i32, %arg1: i32) -> (i32, i32, i32, i32) {
    %c0_i32 = arith.constant 0 : i32
    %c0_i32_0 = arith.constant 0 : i32
    %c0_i32_1 = arith.constant 0 : i32
    return %arg0, %arg1, %c0_i32, %c0_i32_0 : i32, i32, i32, i32
  }
  func.func @transform_1(%arg0: i32, %arg1: i32) -> (i32, i32) {
    %c0_i32 = arith.constant 0 : i32
    %c0_i32_0 = arith.constant 0 : i32
    %c0_i32_1 = arith.constant 0 : i32
    return %c0_i32, %c0_i32_0 : i32, i32
  }
  func.func @transform_2(%arg0: i32, %arg1: i32) -> (i32, i32) {
    %c0_i32 = arith.constant 0 : i32
    %c0_i32_0 = arith.constant 0 : i32
    %c0_i32_1 = arith.constant 0 : i32
    return %c0_i32, %c0_i32_0 : i32, i32
  }
  func.func @transform_3(%arg0: i32, %arg1: i32) -> (i32, i32) {
    %c0_i32 = arith.constant 0 : i32
    %c0_i32_0 = arith.constant 0 : i32
    %c0_i32_1 = arith.constant 0 : i32
    return %c0_i32, %c0_i32_0 : i32, i32
  }
  func.func @transform_4(%arg0: i32, %arg1: i32) -> (i32, i32) {
    %c0_i32 = arith.constant 0 : i32
    %c0_i32_0 = arith.constant 0 : i32
    %c0_i32_1 = arith.constant 0 : i32
    return %c0_i32, %c0_i32_0 : i32, i32
  }
  func.func @transform_5(%arg0: i32, %arg1: i32) -> (i32, i32, i32, i32) {
    %c0_i32 = arith.constant 0 : i32
    %c0_i32_0 = arith.constant 0 : i32
    %c0_i32_1 = arith.constant 0 : i32
    return %arg0, %arg1, %c0_i32, %c0_i32_0 : i32, i32, i32, i32
  }
}

</mosaic_0001>

<llo_original>
// kernel: transition_layer_forward.1
$region0: #{transition_layer_forward.1}
  #allocation0 [shape = 'u32[]', space=smem, size = 0x4, offset = 0x4, fixed_abs, tag = 'smem constant byte address 0x4 - core index']
  #allocation1 [shape = 'u32[144,128]{1,0:T(1,128)}', space=vmem, size = 0x12000, scoped, tag = 'internal scratch']
  %s0 = inlined_call_operand.vmem [shape: f32[2,16,8,8], index: 0, kind: input, shape index: {}]
  %s1 = inlined_call_operand.vmem [shape: f32[1,8], index: 1, kind: input, shape index: {}]
  %s2 = inlined_call_operand.vmem [shape: f32[1,8], index: 2, kind: input, shape index: {}]
  %s3 = inlined_call_operand.vmem [shape: bf16[8,2], index: 3, kind: input, shape index: {}]
  %s4 = inlined_call_operand.vmem [shape: f32[1,2], index: 4, kind: input, shape index: {}]
  %s5 = inlined_call_operand.vmem [shape: f32[2,8,8,2], index: 5, kind: output, shape index: {}]
  %s6 = sld [smem:[#allocation0]]
  $region30: #{transition_layer_forward.1} parent=0
    _
  %s8 = ssub.s32 1, %s6
  %s9 = scalar_select 0, %s8, %s6
  // Predicated region
  $region2: #{transition_layer_forward.1} parent=0 // pred_check
    _
  $region3: #{transition_layer_forward.1} parent=0 // pred_check_branch
    %11 = sbr.rel (0) target = $region5
  $region4: #{transition_layer_forward.1} parent=0 // pred_region
    _
  $region5: #{transition_layer_forward.1} parent=0 // pred_fallthru
    _
  // Predicated region
  $region6: #{transition_layer_forward.1} parent=0 // pred_check
    _
  $region7: #{transition_layer_forward.1} parent=0 // pred_check_branch
    %13 = sbr.rel (0) target = $region9
  $region8: #{transition_layer_forward.1} parent=0 // pred_region
    _
  $region9: #{transition_layer_forward.1} parent=0 // pred_fallthru
    _
  // Predicated region
  $region10: #{transition_layer_forward.1} parent=0 // pred_check
    _
  $region11: #{transition_layer_forward.1} parent=0 // pred_check_branch
    %15 = sbr.rel (0) target = $region13
  $region12: #{transition_layer_forward.1} parent=0 // pred_region
    _
  $region13: #{transition_layer_forward.1} parent=0 // pred_fallthru
    _
  // Predicated region
  $region14: #{transition_layer_forward.1} parent=0 // pred_check
    _
  $region15: #{transition_layer_forward.1} parent=0 // pred_check_branch
    %17 = sbr.rel (0) target = $region17
  $region16: #{transition_layer_forward.1} parent=0 // pred_region
    _
  $region17: #{transition_layer_forward.1} parent=0 // pred_fallthru
    _
  // Predicated region
  $region18: #{transition_layer_forward.1} parent=0 // pred_check
    _
  $region19: #{transition_layer_forward.1} parent=0 // pred_check_branch
    %19 = sbr.rel (0) target = $region21
  $region20: #{transition_layer_forward.1} parent=0 // pred_region
    _
  $region21: #{transition_layer_forward.1} parent=0 // pred_fallthru
    _
  %v21 = vld [vmem:[%s0] sm:$0xff]
  %v22 = vld [vmem:[%s0 + $0x8] sm:$0xff]
  %v23 = vld [vmem:[%s0 + $0x10] sm:$0xff]
  %v24 = vld [vmem:[%s0 + $0x18] sm:$0xff]
  %v25 = vld [vmem:[%s0 + $0x20] sm:$0xff]
  %v26 = vld [vmem:[%s0 + $0x28] sm:$0xff]
  %v27 = vld [vmem:[%s0 + $0x30] sm:$0xff]
  %v28 = vld [vmem:[%s0 + $0x38] sm:$0xff]
  %v29 = vld [vmem:[%s0 + $0x40] sm:$0xff]
  %v30 = vld [vmem:[%s0 + $0x48] sm:$0xff]
  %v31 = vld [vmem:[%s0 + $0x50] sm:$0xff]
  %v32 = vld [vmem:[%s0 + $0x58] sm:$0xff]
  %v33 = vld [vmem:[%s0 + $0x60] sm:$0xff]
  %v34 = vld [vmem:[%s0 + $0x68] sm:$0xff]
  %v35 = vld [vmem:[%s0 + $0x70] sm:$0xff]
  %v36 = vld [vmem:[%s0 + $0x78] sm:$0xff]
  %v37 = vld [vmem:[%s0 + $0x80] sm:$0xff]
  %v38 = vld [vmem:[%s0 + $0x88] sm:$0xff]
  %v39 = vld [vmem:[%s0 + $0x90] sm:$0xff]
  %v40 = vld [vmem:[%s0 + $0x98] sm:$0xff]
  %v41 = vld [vmem:[%s0 + $0xa0] sm:$0xff]
  %v42 = vld [vmem:[%s0 + $0xa8] sm:$0xff]
  %v43 = vld [vmem:[%s0 + $0xb0] sm:$0xff]
  %v44 = vld [vmem:[%s0 + $0xb8] sm:$0xff]
  %v45 = vld [vmem:[%s0 + $0xc0] sm:$0xff]
  %v46 = vld [vmem:[%s0 + $0xc8] sm:$0xff]
  %v47 = vld [vmem:[%s0 + $0xd0] sm:$0xff]
  %v48 = vld [vmem:[%s0 + $0xd8] sm:$0xff]
  %v49 = vld [vmem:[%s0 + $0xe0] sm:$0xff]
  %v50 = vld [vmem:[%s0 + $0xe8] sm:$0xff]
  %v51 = vld [vmem:[%s0 + $0xf0] sm:$0xff]
  %v52 = vld [vmem:[%s0 + $0xf8] sm:$0xff]
  %v53 = vld [vmem:[%s1] sm:$0x1]
  %v54 = vld [vmem:[%s2] sm:$0x1]
  %v56 = vlaneseq
  %v57 = vshrl.u32 %v56, 7
  %v58 = vsub.s32 0, %v57
  %v59 = vrot.slane %v53, %v58
  %v61 = vmul.f32 %v21, %v59
  %v62 = vmul.f32 %v22, %v59
  %v63 = vmul.f32 %v23, %v59
  %v64 = vmul.f32 %v24, %v59
  %v65 = vmul.f32 %v25, %v59
  %v66 = vmul.f32 %v26, %v59
  %v67 = vmul.f32 %v27, %v59
  %v68 = vmul.f32 %v28, %v59
  %v69 = vmul.f32 %v29, %v59
  %v70 = vmul.f32 %v30, %v59
  %v71 = vmul.f32 %v31, %v59
  %v72 = vmul.f32 %v32, %v59
  %v73 = vmul.f32 %v33, %v59
  %v74 = vmul.f32 %v34, %v59
  %v75 = vmul.f32 %v35, %v59
  %v76 = vmul.f32 %v36, %v59
  %v77 = vmul.f32 %v37, %v59
  %v78 = vmul.f32 %v38, %v59
  %v79 = vmul.f32 %v39, %v59
  %v80 = vmul.f32 %v40, %v59
  %v81 = vmul.f32 %v41, %v59
  %v82 = vmul.f32 %v42, %v59
  %v83 = vmul.f32 %v43, %v59
  %v84 = vmul.f32 %v44, %v59
  %v85 = vmul.f32 %v45, %v59
  %v86 = vmul.f32 %v46, %v59
  %v87 = vmul.f32 %v47, %v59
  %v88 = vmul.f32 %v48, %v59
  %v89 = vmul.f32 %v49, %v59
  %v90 = vmul.f32 %v50, %v59
  %v91 = vmul.f32 %v51, %v59
  %v92 = vmul.f32 %v52, %v59
  %v94 = vlaneseq
  %v95 = vshrl.u32 %v94, 7
  %v96 = vsub.s32 0, %v95
  %v97 = vrot.slane %v54, %v96
  %v99 = vadd.f32 %v61, %v97
  %v100 = vadd.f32 %v62, %v97
  %v101 = vadd.f32 %v63, %v97
  %v102 = vadd.f32 %v64, %v97
  %v103 = vadd.f32 %v65, %v97
  %v104 = vadd.f32 %v66, %v97
  %v105 = vadd.f32 %v67, %v97
  %v106 = vadd.f32 %v68, %v97
  %v107 = vadd.f32 %v69, %v97
  %v108 = vadd.f32 %v70, %v97
  %v109 = vadd.f32 %v71, %v97
  %v110 = vadd.f32 %v72, %v97
  %v111 = vadd.f32 %v73, %v97
  %v112 = vadd.f32 %v74, %v97
  %v113 = vadd.f32 %v75, %v97
  %v114 = vadd.f32 %v76, %v97
  %v115 = vadd.f32 %v77, %v97
  %v116 = vadd.f32 %v78, %v97
  %v117 = vadd.f32 %v79, %v97
  %v118 = vadd.f32 %v80, %v97
  %v119 = vadd.f32 %v81, %v97
  %v120 = vadd.f32 %v82, %v97
  %v121 = vadd.f32 %v83, %v97
  %v122 = vadd.f32 %v84, %v97
  %v123 = vadd.f32 %v85, %v97
  %v124 = vadd.f32 %v86, %v97
  %v125 = vadd.f32 %v87, %v97
  %v126 = vadd.f32 %v88, %v97
  %v127 = vadd.f32 %v89, %v97
  %v128 = vadd.f32 %v90, %v97
  %v129 = vadd.f32 %v91, %v97
  %v130 = vadd.f32 %v92, %v97
  %v131 = vmax.f32 %v99, 0.0
  %v132 = vmax.f32 %v100, 0.0
  %v133 = vmax.f32 %v101, 0.0
  %v134 = vmax.f32 %v102, 0.0
  %v135 = vmax.f32 %v103, 0.0
  %v136 = vmax.f32 %v104, 0.0
  %v137 = vmax.f32 %v105, 0.0
  %v138 = vmax.f32 %v106, 0.0
  %v139 = vmax.f32 %v107, 0.0
  %v140 = vmax.f32 %v108, 0.0
  %v141 = vmax.f32 %v109, 0.0
  %v142 = vmax.f32 %v110, 0.0
  %v143 = vmax.f32 %v111, 0.0
  %v144 = vmax.f32 %v112, 0.0
  %v145 = vmax.f32 %v113, 0.0
  %v146 = vmax.f32 %v114, 0.0
  %v147 = vmax.f32 %v115, 0.0
  %v148 = vmax.f32 %v116, 0.0
  %v149 = vmax.f32 %v117, 0.0
  %v150 = vmax.f32 %v118, 0.0
  %v151 = vmax.f32 %v119, 0.0
  %v152 = vmax.f32 %v120, 0.0
  %v153 = vmax.f32 %v121, 0.0
  %v154 = vmax.f32 %v122, 0.0
  %v155 = vmax.f32 %v123, 0.0
  %v156 = vmax.f32 %v124, 0.0
  %v157 = vmax.f32 %v125, 0.0
  %v158 = vmax.f32 %v126, 0.0
  %v159 = vmax.f32 %v127, 0.0
  %v160 = vmax.f32 %v128, 0.0
  %v161 = vmax.f32 %v129, 0.0
  %v162 = vmax.f32 %v130, 0.0
  %v163 = vadd.f32 %v131, %v132
  %v164 = vadd.f32 %v133, %v134
  %v165 = vadd.f32 %v135, %v136
  %v166 = vadd.f32 %v137, %v138
  %v167 = vadd.f32 %v139, %v140
  %v168 = vadd.f32 %v141, %v142
  %v169 = vadd.f32 %v143, %v144
  %v170 = vadd.f32 %v145, %v146
  %v171 = vadd.f32 %v147, %v148
  %v172 = vadd.f32 %v149, %v150
  %v173 = vadd.f32 %v151, %v152
  %v174 = vadd.f32 %v153, %v154
  %v175 = vadd.f32 %v155, %v156
  %v176 = vadd.f32 %v157, %v158
  %v177 = vadd.f32 %v159, %v160
  %v178 = vadd.f32 %v161, %v162
  %v179 = vpack.c.bf16 %v164, %v163
  %v180 = vpack.c.bf16 %v166, %v165
  %v181 = vpack.c.bf16 %v168, %v167
  %v182 = vpack.c.bf16 %v170, %v169
  %v183 = vpack.c.bf16 %v172, %v171
  %v184 = vpack.c.bf16 %v174, %v173
  %v185 = vpack.c.bf16 %v176, %v175
  %v186 = vpack.c.bf16 %v178, %v177
  %v187 = vld [vmem:[%s3] sm:$0xf]
  %v188 = vld [vmem:[%s4] sm:$0x1]
  %v190 = vlaneseq
  %v191 = vshrl.u32 %v190, 7
  %v192 = vsub.s32 0, %v191
  %v193 = vrot.slane %v188, %v192
  %vm195 = vcmask 64512
  %v197 = vsel %vm195, %v179, 0
  %v200 = vsel %vm195, %v180, 0
  %v203 = vsel %vm195, %v181, 0
  %v206 = vsel %vm195, %v182, 0
  %v209 = vsel %vm195, %v183, 0
  %v212 = vsel %vm195, %v184, 0
  %v215 = vsel %vm195, %v185, 0
  %v218 = vsel %vm195, %v186, 0
  %vm220 = vcmask 1043456
  %v222 = vsel %vm220, %v187, 0
  %224 = vmatprep.subr.bf16.mxu0 0
  %225 = vmatpush1.bf16.msra.mxu0 %v222
  %226 = vmatprep.subr.bf16.mxu0 0
  %227 = vmatpush1.bf16.msra.mxu0 0
  %228 = vmatprep.subr.bf16.mxu0 0
  %229 = vmatpush1.bf16.msra.mxu0 0
  %230 = vmatprep.subr.bf16.mxu0 0
  %231 = vmatpush1.bf16.msra.mxu0 0
  %232 = vmatprep.subr.bf16.mxu0 0
  %233 = vmatpush1.bf16.msra.mxu0 0
  %234 = vmatprep.subr.bf16.mxu0 0
  %235 = vmatpush1.bf16.msra.mxu0 0
  %236 = vmatprep.subr.bf16.mxu0 0
  %237 = vmatpush1.bf16.msra.mxu0 0
  %238 = vmatprep.subr.bf16.mxu0 0
  %239 = vmatpush1.bf16.msra.mxu0 0
  %240 = vmatprep.subr.bf16.mxu0 0
  %241 = vmatpush1.bf16.msra.mxu0 0
  %242 = vmatprep.subr.bf16.mxu0 0
  %243 = vmatpush1.bf16.msra.mxu0 0
  %244 = vmatprep.subr.bf16.mxu0 0
  %245 = vmatpush1.bf16.msra.mxu0 0
  %246 = vmatprep.subr.bf16.mxu0 0
  %247 = vmatpush1.bf16.msra.mxu0 0
  %248 = vmatprep.subr.bf16.mxu0 0
  %249 = vmatpush1.bf16.msra.mxu0 0
  %250 = vmatprep.subr.bf16.mxu0 0
  %251 = vmatpush1.bf16.msra.mxu0 0
  %252 = vmatprep.subr.bf16.mxu0 0
  %253 = vmatpush1.bf16.msra.mxu0 0
  %254 = vmatprep.subr.bf16.mxu0 0
  %255 = vmatpush1.bf16.msra.mxu0 0
  %256 = vmatprep.mubr.bf16.mxu0 0
  %257 = vmatmul.mubr.bf16.gmra.mrb[0].mxu0 %v197
  %v258 = vpop.f32.mrb[0].mxu0
  %v259 = vadd.f32 %v193, %v258
  %v260 = vpop.f32.mrb[0].mxu0
  %v261 = vpop.f32.mrb[0].mxu0
  %v262 = vadd.f32 %v193, %v261
  %v263 = vpop.f32.mrb[0].mxu0
  %264 = vmatprep.mubr.bf16.mxu0 0
  %265 = vmatmul.mubr.bf16.gmra.mrb[0].mxu0 %v200
  %v266 = vpop.f32.mrb[0].mxu0
  %v267 = vadd.f32 %v193, %v266
  %v268 = vpop.f32.mrb[0].mxu0
  %v269 = vpop.f32.mrb[0].mxu0
  %v270 = vadd.f32 %v193, %v269
  %v271 = vpop.f32.mrb[0].mxu0
  %272 = vmatprep.mubr.bf16.mxu0 0
  %273 = vmatmul.mubr.bf16.gmra.mrb[0].mxu0 %v203
  %v274 = vpop.f32.mrb[0].mxu0
  %v275 = vadd.f32 %v193, %v274
  %v276 = vpop.f32.mrb[0].mxu0
  %v277 = vpop.f32.mrb[0].mxu0
  %v278 = vadd.f32 %v193, %v277
  %v279 = vpop.f32.mrb[0].mxu0
  %280 = vmatprep.mubr.bf16.mxu0 0
  %281 = vmatmul.mubr.bf16.gmra.mrb[0].mxu0 %v206
  %v282 = vpop.f32.mrb[0].mxu0
  %v283 = vadd.f32 %v193, %v282
  %v284 = vpop.f32.mrb[0].mxu0
  %v285 = vpop.f32.mrb[0].mxu0
  %v286 = vadd.f32 %v193, %v285
  %v287 = vpop.f32.mrb[0].mxu0
  %288 = vmatprep.mubr.bf16.mxu0 0
  %289 = vmatmul.mubr.bf16.gmra.mrb[0].mxu0 %v209
  %v290 = vpop.f32.mrb[0].mxu0
  %v291 = vadd.f32 %v193, %v290
  %v292 = vpop.f32.mrb[0].mxu0
  %v293 = vpop.f32.mrb[0].mxu0
  %v294 = vadd.f32 %v193, %v293
  %v295 = vpop.f32.mrb[0].mxu0
  %296 = vmatprep.mubr.bf16.mxu0 0
  %297 = vmatmul.mubr.bf16.gmra.mrb[0].mxu0 %v212
  %v298 = vpop.f32.mrb[0].mxu0
  %v299 = vadd.f32 %v193, %v298
  %v300 = vpop.f32.mrb[0].mxu0
  %v301 = vpop.f32.mrb[0].mxu0
  %v302 = vadd.f32 %v193, %v301
  %v303 = vpop.f32.mrb[0].mxu0
  %304 = vmatprep.mubr.bf16.mxu0 0
  %305 = vmatmul.mubr.bf16.gmra.mrb[0].mxu0 %v215
  %v306 = vpop.f32.mrb[0].mxu0
  %v307 = vadd.f32 %v193, %v306
  %v308 = vpop.f32.mrb[0].mxu0
  %v309 = vpop.f32.mrb[0].mxu0
  %v310 = vadd.f32 %v193, %v309
  %v311 = vpop.f32.mrb[0].mxu0
  %312 = vmatprep.mubr.bf16.mxu0 0
  %313 = vmatmul.mubr.bf16.gmra.mrb[0].mxu0 %v218
  %v314 = vpop.f32.mrb[0].mxu0
  %v315 = vadd.f32 %v193, %v314
  %v316 = vpop.f32.mrb[0].mxu0
  %v317 = vpop.f32.mrb[0].mxu0
  %v318 = vadd.f32 %v193, %v317
  %v319 = vpop.f32.mrb[0].mxu0
  %320 = vdwg.mxu0
  %vm321 = vcmask 15360
  %322 = vst.msk [vmem:[%s5] sm:$0xff] %vm321, %v259
  %323 = vst.msk [vmem:[%s5 + $0x8] sm:$0xff] %vm321, %v262
  %324 = vst.msk [vmem:[%s5 + $0x10] sm:$0xff] %vm321, %v267
  %325 = vst.msk [vmem:[%s5 + $0x18] sm:$0xff] %vm321, %v270
  %326 = vst.msk [vmem:[%s5 + $0x20] sm:$0xff] %vm321, %v275
  %327 = vst.msk [vmem:[%s5 + $0x28] sm:$0xff] %vm321, %v278
  %328 = vst.msk [vmem:[%s5 + $0x30] sm:$0xff] %vm321, %v283
  %329 = vst.msk [vmem:[%s5 + $0x38] sm:$0xff] %vm321, %v286
  %330 = vst.msk [vmem:[%s5 + $0x40] sm:$0xff] %vm321, %v291
  %331 = vst.msk [vmem:[%s5 + $0x48] sm:$0xff] %vm321, %v294
  %332 = vst.msk [vmem:[%s5 + $0x50] sm:$0xff] %vm321, %v299
  %333 = vst.msk [vmem:[%s5 + $0x58] sm:$0xff] %vm321, %v302
  %334 = vst.msk [vmem:[%s5 + $0x60] sm:$0xff] %vm321, %v307
  %335 = vst.msk [vmem:[%s5 + $0x68] sm:$0xff] %vm321, %v310
  %336 = vst.msk [vmem:[%s5 + $0x70] sm:$0xff] %vm321, %v315
  %337 = vst.msk [vmem:[%s5 + $0x78] sm:$0xff] %vm321, %v318
  // Predicated region
  $region22: #{transition_layer_forward.1} parent=0 // pred_check
    _
  $region23: #{transition_layer_forward.1} parent=0 // pred_check_branch
    %339 = sbr.rel (0) target = $region25
  $region24: #{transition_layer_forward.1} parent=0 // pred_region
    _
  $region25: #{transition_layer_forward.1} parent=0 // pred_fallthru
    _
  // Predicated region
  $region26: #{transition_layer_forward.1} parent=0 // pred_check
    _
  $region27: #{transition_layer_forward.1} parent=0 // pred_check_branch
    %341 = sbr.rel (0) target = $region29
  $region28: #{transition_layer_forward.1} parent=0 // pred_region
    _
  $region29: #{transition_layer_forward.1} parent=0 // pred_fallthru
    _

</llo_original>
